<compile_context>
chip_gen: v7x
topology: tpu7x:2x2x1
jax: 0.10.0
libtpu: 0.0.40
codegen_flags: <defaults>
</compile_context>

<pallas_src>
import numpy as np
import jax
import jax.numpy as jnp
from jax.experimental import pallas as pl
from jax.experimental.pallas import tpu as pltpu


def _round_up(a, m):
    return ((a + m - 1) // m) * m


def _cdiv(a, b):
    return (a + b - 1) // b


# ---------------- mask construction (numpy, deterministic) ----------------
def sample_mask_indices(D, H, rng):
    mk = np.linspace(0, D - 1, H)
    ints = np.array(mk, dtype=int)
    ints = ints + (rng.rand() < (mk - ints))
    return ints


def create_mask(D_observed, D_latent, H, num_layers, rng):
    m_input = np.concatenate((np.zeros(D_observed), 1 + np.arange(D_latent)))
    m_w = [sample_mask_indices(D_latent, H, rng) for _ in range(num_layers)]
    m_v = np.arange(D_latent)
    M_A = 1.0 * (np.atleast_2d(m_v).T >= np.atleast_2d(m_input))
    M_W = [1.0 * (np.atleast_2d(m_w[0]).T >= np.atleast_2d(m_input))]
    for i in range(1, num_layers):
        M_W.append(1.0 * (np.atleast_2d(m_w[i]).T >= np.atleast_2d(m_w[i - 1])))
    M_V = 1.0 * (np.atleast_2d(m_v).T >= np.atleast_2d(m_w[-1]))
    return M_W, M_V, M_A


# ---------------- parameter setup (deterministic, synthetic) ----------------
def init_params(key, D_observed, D_latent, H, num_layers, K):
    D_in = D_observed + D_latent
    D_out = D_latent
    KD = K * D_out
    P = max(128, _round_up(KD, 128))          # padded lane width per head segment
    rng = np.random.RandomState(0)
    M_W, M_V, M_A = create_mask(D_observed, D_latent, H, num_layers, rng)

    keys = list(jax.random.split(key, 8 + 2 * num_layers + 12 * K))
    kit = iter(keys)

    def w_uniform(shape):  # torch: init.uniform(param, a=-0.01, b=0.01) (2-D params)
        return jax.random.uniform(next(kit), shape, jnp.float32, -0.01, 0.01)

    def b_normal(shape):   # torch: init.normal(param, std=0.01) (1-D params)
        return 0.01 * jax.random.normal(next(kit), shape, jnp.float32)

    # hidden MADE trunk (masked, bias), weights stored as (in, out)
    layer_W, layer_b = [], []
    in_dim = D_in
    for i in range(num_layers):
        W = w_uniform((H, in_dim)) * jnp.asarray(M_W[i], jnp.float32)  # (out, in) masked
        layer_W.append(W.T)                                            # (in, out)
        layer_b.append(b_normal((1, H)))
        in_dim = H

    MV = jnp.asarray(M_V, jnp.float32)  # (D_out, H)
    MA = jnp.asarray(M_A, jnp.float32)  # (D_out, D_in)

    def head_stack(mask, in_d, with_bias):
        Ws, bs = [], []
        for _ in range(K):
            W = w_uniform((D_out, in_d)) * mask   # (out, in) masked
            Ws.append(W.T)                        # (in, out)
            if with_bias:
                bs.append(b_normal((1, D_out)))
        Wst = jnp.stack(Ws, 0)                    # (K, in, D_out)
        bst = jnp.stack(bs, 0) if with_bias else None
        return Wst, bst

    aW, ab = head_stack(MV, H, True)       # alpha heads
    mW, mb = head_stack(MV, H, True)       # mu heads
    sW, sb = head_stack(MV, H, True)       # sigma heads
    saW, _ = head_stack(MA, D_in, False)   # skip_alpha (no bias)
    smW, _ = head_stack(MA, D_in, False)   # skip_mu
    ssW, _ = head_stack(MA, D_in, False)   # skip_sigma

    # ---- fuse the K heads and the 3 output types into wide, lane-padded matrices ----
    # real columns ordered (d, k) d-major: column = d*K + k  -> wrapper reshape is free
    def fuse_cols(Wk):  # (K, in, D_out) -> (in, KD)
        return jnp.transpose(Wk, (1, 2, 0)).reshape(Wk.shape[1], KD)

    def pad_cols(W):    # (in, KD) -> (in, P) zero-padded (lane-dense 128 segment)
        return jnp.pad(W, ((0, 0), (0, P - KD)))

    W_head = jnp.concatenate([pad_cols(fuse_cols(aW)),
                              pad_cols(fuse_cols(mW)),
                              pad_cols(fuse_cols(sW))], axis=1)     # (H, 3*P)
    W_skip = jnp.concatenate([pad_cols(fuse_cols(saW)),
                              pad_cols(fuse_cols(smW)),
                              pad_cols(fuse_cols(ssW))], axis=1)    # (D_in, 3*P)
    b_head = jnp.concatenate([pad_cols(fuse_cols(ab)),
                              pad_cols(fuse_cols(mb)),
                              pad_cols(fuse_cols(sb))], axis=1)     # (1, 3*P)

    # group-sum matrix for the per-dim softmax on the padded segment.
    # KD is a multiple of K, so padding columns never share a group with real
    # columns; they form their own groups -> every denominator stays positive.
    gi = np.arange(P)
    G = jnp.asarray(1.0 * (gi[:, None] // K == gi[None, :] // K), jnp.float32)  # (P, P)

    return dict(layer_W=layer_W, layer_b=layer_b,
                aW=aW, ab=ab, mW=mW, mb=mb, sW=sW, sb=sb,
                saW=saW, smW=smW, ssW=ssW,
                W_head=W_head, W_skip=W_skip, b_head=b_head, G=G,
                D_in=D_in, D_out=D_out, H=H, K=K, num_layers=num_layers, P=P)


# ---------------- Pallas kernel ----------------
def _softplus(z):
    # matches torch.nn.Softplus (beta=1, threshold=20)
    return jnp.where(z > 20.0, z, jnp.log1p(jnp.exp(jnp.minimum(z, 20.0))))


def _make_kernel(num_layers, P):
    def kernel(*refs):
        i = 0
        x_ref = refs[i]; i += 1
        trunk = []
        for _ in range(num_layers):
            trunk.append((refs[i], refs[i + 1])); i += 2
        wh_ref, wx_ref, bf_ref, g_ref = refs[i:i + 4]; i += 4
        out_ref = refs[i]

        x = x_ref[...]                                    # (tb, D_in)

        # masked MLP trunk with ReLU
        h = x
        for W_ref, b_ref in trunk:
            h = jnp.maximum(
                jnp.dot(h, W_ref[...], preferred_element_type=jnp.float32) + b_ref[...],
                0.0)

        # fused heads + skip connection: two wide MXU dots + one bias add
        y = (jnp.dot(h, wh_ref[...], preferred_element_type=jnp.float32)
             + jnp.dot(x, wx_ref[...], preferred_element_type=jnp.float32)
             + bf_ref[...])                               # (tb, 3*P)

        la = y[:, :P]            # 128-lane aligned static slices: zero-cost views
        mu = y[:, P:2 * P]
        zs = y[:, 2 * P:]

        # mu / sigma segments: lane-dense, tile-aligned stores
        out_ref[:, P:2 * P] = mu
        out_ref[:, 2 * P:] = jnp.maximum(_softplus(zs), 1e-6)

        # softmax over the K components of each output dim.  Columns are grouped
        # d-major / k-minor; subtracting the per-ROW max is softmax-invariant
        # (it is constant within every group) and overflow-safe.  Group sums are
        # broadcast back via a 0/1 matmul; the clamp only guards a fully
        # underflowed group (0/0) -> yields 0 instead of NaN in that edge case.
        A = jnp.max(la, axis=-1, keepdims=True)
        p = jnp.exp(la - A)
        denom = jnp.maximum(
            jnp.dot(p, g_ref[...], preferred_element_type=jnp.float32), 1e-30)
        out_ref[:, :P] = p / denom                        # exact divide (1e-5 parity)

    return kernel


def made_forward(x, params, *, block_b=1024):
    B = x.shape[0]
    D_in = params["D_in"]
    D_out = params["D_out"]
    H = params["H"]
    K = params["K"]
    num_layers = params["num_layers"]
    P = params["P"]
    KD = K * D_out

    # --- batch tiling: cdiv grid + zero row-padding (no whole-batch fallback);
    #     tile is a multiple of 8 and the grid has >= 2 steps whenever B > 8 so
    #     the batch axis can shard across both TensorCores on v7x. ---
    tb = max(8, min(_round_up(block_b, 8), _round_up(B, 8)))
    if _cdiv(B, tb) < 2 and B > 8:
        tb = max(8, _round_up(_cdiv(B, 2), 8))
    n_steps = _cdiv(B, tb)
    B_pad = n_steps * tb
    if B_pad != B:
        x = jnp.pad(x, ((0, B_pad - B), (0, 0)))   # zero rows flow through safely

    def batch_spec(last):
        return pl.BlockSpec((tb, last), lambda i: (i, 0))

    def const_spec(shape):
        # full-extent block, constant index map -> stays resident, DMA'd once
        return pl.BlockSpec(shape, lambda i: (0, 0))

    inputs = [x]
    in_specs = [batch_spec(D_in)]
    in_dim = D_in
    for W, b in zip(params["layer_W"], params["layer_b"]):
        inputs += [W, b]
        in_specs += [const_spec((in_dim, H)), const_spec((1, H))]
        in_dim = H
    inputs += [params["W_head"], params["W_skip"], params["b_head"], params["G"]]
    in_specs += [const_spec((H, 3 * P)), const_spec((D_in, 3 * P)),
                 const_spec((1, 3 * P)), const_spec((P, P))]

    out = pl.pallas_call(
        _make_kernel(num_layers, P),
        grid=(n_steps,),
        out_shape=jax.ShapeDtypeStruct((B_pad, 3 * P), jnp.float32),
        in_specs=in_specs,
        out_specs=batch_spec(3 * P),
        compiler_params=pltpu.CompilerParams(
            dimension_semantics=("parallel",),      # megacore sharding on v7x
            # Raises v5e's 16 MiB default scoped limit for the larger
            # double-buffered (tb, 3*128) output tiles, while staying well
            # under v7x's 64 MiB physical VMEM (tb=2048 uses < 8 MiB).
            vmem_limit_bytes=32 * 1024 * 1024),
    )(*inputs)

    out = out[:B]
    shape = (B, D_out, K)
    alpha = out[:, :KD].reshape(shape)                   # (d, k) d-major -> free reshape
    mu = out[:, P:P + KD].reshape(shape)
    sigma = out[:, 2 * P:2 * P + KD].reshape(shape)
    return alpha, mu, sigma


# ---------------- pure-JAX reference (for verification) ----------------
def made_forward_ref(x, params):
    K = params["K"]
    h = x
    for W, b in zip(params["layer_W"], params["layer_b"]):
        h = jax.nn.relu(h @ W + b)
    la, mu, sg = [], [], []
    for k in range(K):
        la.append(h @ params["aW"][k] + params["ab"][k] + x @ params["saW"][k])
        mu.append(h @ params["mW"][k] + params["mb"][k] + x @ params["smW"][k])
        z = h @ params["sW"][k] + params["sb"][k] + x @ params["ssW"][k]
        sg.append(jnp.maximum(jax.nn.softplus(z), 1e-6))
    la = jnp.stack(la, 2)   # [B, D_out, K]
    mu = jnp.stack(mu, 2)
    sg = jnp.stack(sg, 2)
    alpha = jax.nn.softmax(la, axis=2)
    return alpha, mu, sg


if __name__ == "__main__":
    # TODO(synk): sample()/logpdf()/propose() (sequential autoregressive loops) are
    # not implemented; only the forward() pass is kernelized.
    D_observed, D_latent, H, num_layers, K = 3, 5, 32, 2, 4
    B = 50  # deliberately not a multiple of the tile -> exercises cdiv grid + padding

    key = jax.random.PRNGKey(0)
    kx, kp = jax.random.split(key)
    params = init_params(kp, D_observed, D_latent, H, num_layers, K)
    x = jax.random.normal(kx, (B, params["D_in"]), jnp.float32)

    alpha, mu, sigma = made_forward(x, params)
    jax.block_until_ready((alpha, mu, sigma))

    a_ref, m_ref, s_ref = made_forward_ref(x, params)
    np.testing.assert_allclose(np.asarray(alpha), np.asarray(a_ref), rtol=1e-5, atol=1e-5)
    np.testing.assert_allclose(np.asarray(mu), np.asarray(m_ref), rtol=1e-5, atol=1e-5)
    np.testing.assert_allclose(np.asarray(sigma), np.asarray(s_ref), rtol=1e-5, atol=1e-5)

    assert alpha.shape == (B, D_latent, K)
    assert mu.shape == (B, D_latent, K)
    assert sigma.shape == (B, D_latent, K)
    print("KERNEL_OK")
</pallas_src>

<mosaic_0001>
module attributes {stable_mosaic.version = 11 : i64} {
  func.func @kernel(%arg0: i32, %arg1: memref<32x8xf32, #tpu.memory_space<vmem>>, %arg2: memref<8x32xf32, #tpu.memory_space<vmem>>, %arg3: memref<1x32xf32, #tpu.memory_space<vmem>>, %arg4: memref<32x32xf32, #tpu.memory_space<vmem>>, %arg5: memref<1x32xf32, #tpu.memory_space<vmem>>, %arg6: memref<32x384xf32, #tpu.memory_space<vmem>>, %arg7: memref<8x384xf32, #tpu.memory_space<vmem>>, %arg8: memref<1x384xf32, #tpu.memory_space<vmem>>, %arg9: memref<128x128xf32, #tpu.memory_space<vmem>>, %arg10: memref<32x384xf32, #tpu.memory_space<vmem>>) attributes {dimension_semantics = [#tpu.dimension_semantics<parallel>], iteration_bounds = array<i64: 2>, scalar_prefetch = 0 : i64, scratch_operands = 0 : i64, tpu.core_type = #tpu.core_type<tc>, window_params = [{transform_indices = @transform_0, window_bounds = array<i64: 32, 8>}, {pipeline_mode = #tpu.pipeline_mode<synchronous>, transform_indices = @transform_1, window_bounds = array<i64: 8, 32>}, {pipeline_mode = #tpu.pipeline_mode<synchronous>, transform_indices = @transform_2, window_bounds = array<i64: 1, 32>}, {pipeline_mode = #tpu.pipeline_mode<synchronous>, transform_indices = @transform_3, window_bounds = array<i64: 32, 32>}, {pipeline_mode = #tpu.pipeline_mode<synchronous>, transform_indices = @transform_4, window_bounds = array<i64: 1, 32>}, {pipeline_mode = #tpu.pipeline_mode<synchronous>, transform_indices = @transform_5, window_bounds = array<i64: 32, 384>}, {pipeline_mode = #tpu.pipeline_mode<synchronous>, transform_indices = @transform_6, window_bounds = array<i64: 8, 384>}, {pipeline_mode = #tpu.pipeline_mode<synchronous>, transform_indices = @transform_7, window_bounds = array<i64: 1, 384>}, {pipeline_mode = #tpu.pipeline_mode<synchronous>, transform_indices = @transform_8, window_bounds = array<i64: 128, 128>}, {transform_indices = @transform_9, window_bounds = array<i64: 32, 384>}]} {
    %c0 = arith.constant 0 : index
    %c0_0 = arith.constant 0 : index
    %0 = vector.load %arg1[%c0, %c0_0] : memref<32x8xf32, #tpu.memory_space<vmem>>, vector<32x8xf32>
    %c0_1 = arith.constant 0 : index
    %c0_2 = arith.constant 0 : index
    %1 = vector.load %arg2[%c0_1, %c0_2] : memref<8x32xf32, #tpu.memory_space<vmem>>, vector<8x32xf32>
    %cst = arith.constant dense<0.000000e+00> : vector<32x32xf32>
    %2 = tpu.matmul %0, %1, %cst {dimension_numbers = #tpu.dot_dimension_numbers<[1], [0], [0], [1], [0, 0, 1, 1], [], []>} : vector<32x8xf32>, vector<8x32xf32>, vector<32x32xf32> -> vector<32x32xf32>
    %c0_3 = arith.constant 0 : index
    %c0_4 = arith.constant 0 : index
    %3 = vector.load %arg3[%c0_3, %c0_4] : memref<1x32xf32, #tpu.memory_space<vmem>>, vector<1x32xf32>
    %4 = vector.broadcast %3 : vector<1x32xf32> to vector<32x32xf32>
    %5 = arith.addf %2, %4 : vector<32x32xf32>
    %cst_5 = arith.constant 0.000000e+00 : f32
    %6 = vector.broadcast %cst_5 : f32 to vector<32x32xf32>
    %7 = arith.maximumf %5, %6 : vector<32x32xf32>
    %c0_6 = arith.constant 0 : index
    %c0_7 = arith.constant 0 : index
    %8 = vector.load %arg4[%c0_6, %c0_7] : memref<32x32xf32, #tpu.memory_space<vmem>>, vector<32x32xf32>
    %cst_8 = arith.constant dense<0.000000e+00> : vector<32x32xf32>
    %9 = tpu.matmul %7, %8, %cst_8 {dimension_numbers = #tpu.dot_dimension_numbers<[1], [0], [0], [1], [0, 0, 1, 1], [], []>} : vector<32x32xf32>, vector<32x32xf32>, vector<32x32xf32> -> vector<32x32xf32>
    %c0_9 = arith.constant 0 : index
    %c0_10 = arith.constant 0 : index
    %10 = vector.load %arg5[%c0_9, %c0_10] : memref<1x32xf32, #tpu.memory_space<vmem>>, vector<1x32xf32>
    %11 = vector.broadcast %10 : vector<1x32xf32> to vector<32x32xf32>
    %12 = arith.addf %9, %11 : vector<32x32xf32>
    %cst_11 = arith.constant 0.000000e+00 : f32
    %13 = vector.broadcast %cst_11 : f32 to vector<32x32xf32>
    %14 = arith.maximumf %12, %13 : vector<32x32xf32>
    %c0_12 = arith.constant 0 : index
    %c0_13 = arith.constant 0 : index
    %15 = vector.load %arg6[%c0_12, %c0_13] : memref<32x384xf32, #tpu.memory_space<vmem>>, vector<32x384xf32>
    %cst_14 = arith.constant dense<0.000000e+00> : vector<32x384xf32>
    %16 = tpu.matmul %14, %15, %cst_14 {dimension_numbers = #tpu.dot_dimension_numbers<[1], [0], [0], [1], [0, 0, 1, 1], [], []>} : vector<32x32xf32>, vector<32x384xf32>, vector<32x384xf32> -> vector<32x384xf32>
    %c0_15 = arith.constant 0 : index
    %c0_16 = arith.constant 0 : index
    %17 = vector.load %arg7[%c0_15, %c0_16] : memref<8x384xf32, #tpu.memory_space<vmem>>, vector<8x384xf32>
    %cst_17 = arith.constant dense<0.000000e+00> : vector<32x384xf32>
    %18 = tpu.matmul %0, %17, %cst_17 {dimension_numbers = #tpu.dot_dimension_numbers<[1], [0], [0], [1], [0, 0, 1, 1], [], []>} : vector<32x8xf32>, vector<8x384xf32>, vector<32x384xf32> -> vector<32x384xf32>
    %19 = arith.addf %16, %18 : vector<32x384xf32>
    %c0_18 = arith.constant 0 : index
    %c0_19 = arith.constant 0 : index
    %20 = vector.load %arg8[%c0_18, %c0_19] : memref<1x384xf32, #tpu.memory_space<vmem>>, vector<1x384xf32>
    %21 = vector.broadcast %20 : vector<1x384xf32> to vector<32x384xf32>
    %22 = arith.addf %19, %21 : vector<32x384xf32>
    %23 = vector.extract_strided_slice %22 {offsets = [0, 0], sizes = [32, 128], strides = [1, 1]} : vector<32x384xf32> to vector<32x128xf32>
    %24 = vector.extract_strided_slice %22 {offsets = [0, 128], sizes = [32, 128], strides = [1, 1]} : vector<32x384xf32> to vector<32x128xf32>
    %25 = vector.extract_strided_slice %22 {offsets = [0, 256], sizes = [32, 128], strides = [1, 1]} : vector<32x384xf32> to vector<32x128xf32>
    %c0_20 = arith.constant 0 : index
    %c128 = arith.constant 128 : index
    %26 = vector.load %arg10[%c0_20, %c128] : memref<32x384xf32, #tpu.memory_space<vmem>>, vector<32x128xf32>
    tpu.vector_store %arg10[%c0_20, %c128], %24 {strides = array<i32>} : memref<32x384xf32, #tpu.memory_space<vmem>>, vector<32x128xf32>,
    %cst_21 = arith.constant 2.000000e+01 : f32
    %27 = vector.broadcast %cst_21 : f32 to vector<32x128xf32>
    %28 = arith.cmpf ogt, %25, %27 : vector<32x128xf32>
    %cst_22 = arith.constant 2.000000e+01 : f32
    %29 = vector.broadcast %cst_22 : f32 to vector<32x128xf32>
    %30 = arith.minimumf %25, %29 : vector<32x128xf32>
    %31 = math.exp %30 : vector<32x128xf32>
    %32 = math.log1p %31 : vector<32x128xf32>
    %33 = arith.select %28, %25, %32 : vector<32x128xi1>, vector<32x128xf32>
    %cst_23 = arith.constant 9.99999997E-7 : f32
    %34 = vector.broadcast %cst_23 : f32 to vector<32x128xf32>
    %35 = arith.maximumf %33, %34 : vector<32x128xf32>
    %c0_24 = arith.constant 0 : index
    %c256 = arith.constant 256 : index
    %36 = vector.load %arg10[%c0_24, %c256] : memref<32x384xf32, #tpu.memory_space<vmem>>, vector<32x128xf32>
    tpu.vector_store %arg10[%c0_24, %c256], %35 {strides = array<i32>} : memref<32x384xf32, #tpu.memory_space<vmem>>, vector<32x128xf32>,
    %cst_25 = arith.constant dense<0xFF800000> : vector<32xf32>
    %37 = vector.multi_reduction <maximumf>, %23, %cst_25 [1] : vector<32x128xf32> to vector<32xf32>
    %38 = vector.shape_cast %37 : vector<32xf32> to vector<32x1xf32>
    %39 = vector.broadcast %38 : vector<32x1xf32> to vector<32x128xf32>
    %40 = arith.subf %23, %39 : vector<32x128xf32>
    %41 = math.exp %40 : vector<32x128xf32>
    %c0_26 = arith.constant 0 : index
    %c0_27 = arith.constant 0 : index
    %42 = vector.load %arg9[%c0_26, %c0_27] : memref<128x128xf32, #tpu.memory_space<vmem>>, vector<128x128xf32>
    %cst_28 = arith.constant dense<0.000000e+00> : vector<32x128xf32>
    %43 = tpu.matmul %41, %42, %cst_28 {dimension_numbers = #tpu.dot_dimension_numbers<[1], [0], [0], [1], [0, 0, 1, 1], [], []>} : vector<32x128xf32>, vector<128x128xf32>, vector<32x128xf32> -> vector<32x128xf32>
    %cst_29 = arith.constant 1.000000e-30 : f32
    %44 = vector.broadcast %cst_29 : f32 to vector<32x128xf32>
    %45 = arith.maximumf %43, %44 : vector<32x128xf32>
    %46 = arith.divf %41, %45 : vector<32x128xf32>
    %c0_30 = arith.constant 0 : index
    %c0_31 = arith.constant 0 : index
    %47 = vector.load %arg10[%c0_30, %c0_31] : memref<32x384xf32, #tpu.memory_space<vmem>>, vector<32x128xf32>
    tpu.vector_store %arg10[%c0_30, %c0_31], %46 {strides = array<i32>} : memref<32x384xf32, #tpu.memory_space<vmem>>, vector<32x128xf32>,
    return
  }
  func.func @transform_0(%arg0: i32) -> (i32, i32) {
    %c0_i32 = arith.constant 0 : i32
    %c0_i32_0 = arith.constant 0 : i32
    return %arg0, %c0_i32 : i32, i32
  }
  func.func @transform_1(%arg0: i32) -> (i32, i32) {
    %c0_i32 = arith.constant 0 : i32
    %c0_i32_0 = arith.constant 0 : i32
    %c0_i32_1 = arith.constant 0 : i32
    return %c0_i32, %c0_i32_0 : i32, i32
  }
  func.func @transform_2(%arg0: i32) -> (i32, i32) {
    %c0_i32 = arith.constant 0 : i32
    %c0_i32_0 = arith.constant 0 : i32
    %c0_i32_1 = arith.constant 0 : i32
    return %c0_i32, %c0_i32_0 : i32, i32
  }
  func.func @transform_3(%arg0: i32) -> (i32, i32) {
    %c0_i32 = arith.constant 0 : i32
    %c0_i32_0 = arith.constant 0 : i32
    %c0_i32_1 = arith.constant 0 : i32
    return %c0_i32, %c0_i32_0 : i32, i32
  }
  func.func @transform_4(%arg0: i32) -> (i32, i32) {
    %c0_i32 = arith.constant 0 : i32
    %c0_i32_0 = arith.constant 0 : i32
    %c0_i32_1 = arith.constant 0 : i32
    return %c0_i32, %c0_i32_0 : i32, i32
  }
  func.func @transform_5(%arg0: i32) -> (i32, i32) {
    %c0_i32 = arith.constant 0 : i32
    %c0_i32_0 = arith.constant 0 : i32
    %c0_i32_1 = arith.constant 0 : i32
    return %c0_i32, %c0_i32_0 : i32, i32
  }
  func.func @transform_6(%arg0: i32) -> (i32, i32) {
    %c0_i32 = arith.constant 0 : i32
    %c0_i32_0 = arith.constant 0 : i32
    %c0_i32_1 = arith.constant 0 : i32
    return %c0_i32, %c0_i32_0 : i32, i32
  }
  func.func @transform_7(%arg0: i32) -> (i32, i32) {
    %c0_i32 = arith.constant 0 : i32
    %c0_i32_0 = arith.constant 0 : i32
    %c0_i32_1 = arith.constant 0 : i32
    return %c0_i32, %c0_i32_0 : i32, i32
  }
  func.func @transform_8(%arg0: i32) -> (i32, i32) {
    %c0_i32 = arith.constant 0 : i32
    %c0_i32_0 = arith.constant 0 : i32
    %c0_i32_1 = arith.constant 0 : i32
    return %c0_i32, %c0_i32_0 : i32, i32
  }
  func.func @transform_9(%arg0: i32) -> (i32, i32) {
    %c0_i32 = arith.constant 0 : i32
    %c0_i32_0 = arith.constant 0 : i32
    return %arg0, %c0_i32 : i32, i32
  }
}

</mosaic_0001>

<llo_original>
// kernel: tpu_custom_call.1
$region0: #{tpu_custom_call.1}
  #allocation0 [shape = 'u32[]', space=smem, size = 0x4, offset = 0x4, fixed_abs, tag = 'smem constant byte address 0x4 - core index']
  #allocation1 [shape = 'u32[144,128]{1,0:T(1,128)}', space=vmem, size = 0x12000, scoped, tag = 'internal scratch']
  %s0 = inlined_call_operand.vmem [shape: f32[64,8], index: 0, kind: input, shape index: {}]
  %s1 = inlined_call_operand.vmem [shape: f32[8,32], index: 1, kind: input, shape index: {}]
  %s2 = inlined_call_operand.vmem [shape: f32[1,32], index: 2, kind: input, shape index: {}]
  %s3 = inlined_call_operand.vmem [shape: f32[32,32], index: 3, kind: input, shape index: {}]
  %s4 = inlined_call_operand.vmem [shape: f32[1,32], index: 4, kind: input, shape index: {}]
  %s5 = inlined_call_operand.hbm [shape: f32[32,384], index: 5, kind: input, shape index: {}]
  %s6 = inlined_call_operand.vmem [shape: f32[8,384], index: 6, kind: input, shape index: {}]
  %s7 = inlined_call_operand.vmem [shape: f32[1,384], index: 7, kind: input, shape index: {}]
  %s8 = inlined_call_operand.hbm [shape: f32[128,128], index: 8, kind: input, shape index: {}]
  %s9 = inlined_call_operand.hbm [shape: f32[64,384], index: 9, kind: output, shape index: {}]
  %s10 = sld [smem:[#allocation0]]
  $region77: #{tpu_custom_call.1} parent=0
    _
  %s12 = ssub.s32 1, %s10
  %s13 = scalar_select 0, %s12, %s10
  $region1: #{tpu_custom_call.1} parent=0
    #allocation2 [shape = 'u8[49152]{0}', space=vmem, size = 0xc000, scoped, tag = 'input window, operand 5, single buffered']
    #allocation3 [shape = 's32[2]{0}', space=sflag, size = 0x8, scoped, tag = 'scoped memory for tpu_custom_call.1']
    #allocation4 [shape = 's32[2]{0}', space=sflag, size = 0x8, scoped, tag = 'scoped memory for tpu_custom_call.1']
    #allocation5 [shape = 'u8[65536]{0}', space=vmem, size = 0x10000, scoped, tag = 'input window, operand 8, single buffered']
    #allocation6 [shape = 's32[1]{0}', space=sflag, size = 0x4, scoped, tag = 'scoped memory for tpu_custom_call.1']
    #allocation7 [shape = 'u8[98304]{0}', space=vmem, size = 0x18000, scoped, tag = 'output window, operand 0']
    %14 = vsyncpa [#allocation3], 0
    %15 = vsyncpa [#allocation6], 0
    %16 = vsyncpa [#allocation4], 0
    %s17 = scalar_lea.sflag [#allocation4], 1
    %18 = vsyncpa %s17, 0
    loop: start=0, step=1, limit=4
    $region2: #{tpu_custom_call.1} parent=1 // loop_pre_header
      _
    $region3: #{tpu_custom_call.1} parent=1 // loop_header
      %s20 = sphi 0, %s24
      %p21 = scmp.ge.s32.totalorder %s20, 4
      %s30 = sphi 0, %s32
      %s33 = sphi 0, %s30
      %s34 = sphi 0, %s33
      %s50 = sphi 0, %s34
      %s54 = sphi 0, %s54
      %s56 = sphi 0, %s54
      %s57 = sphi 0, %s56
      %s71 = sphi 0, %s57
      %s75 = sphi 0, %s75
      %s77 = sphi 0, %s75
      %s78 = sphi 0, %s77
      %s92 = sphi 0, %s78
      %s96 = sphi 0, %s96
      %s98 = sphi 0, %s96
      %s99 = sphi 0, %s98
      %s113 = sphi 0, %s99
      %s117 = sphi 0, %s117
      %s119 = sphi 0, %s117
      %s120 = sphi 0, %s119
      %s134 = sphi 0, %s120
      %s138 = sphi 0, %s138
      %s140 = sphi 0, %s138
      %s141 = sphi 0, %s140
      %s155 = sphi 0, %s141
      %s159 = sphi 0, %s159
      %s161 = sphi 0, %s159
      %s162 = sphi 0, %s161
      %s176 = sphi 0, %s162
      %s180 = sphi 0, %s180
      %s182 = sphi 0, %s180
      %s183 = sphi 0, %s182
      %s197 = sphi 0, %s183
      %s201 = sphi 0, %s201
      %s203 = sphi 0, %s201
      %s204 = sphi 0, %s203
      %s218 = sphi 0, %s204
      %s224 = sphi 0, %s226
      %s227 = sphi 0, %s224
      %s228 = sphi 0, %s227
      %s244 = sphi 0, %s228
    $region4: #{tpu_custom_call.1} parent=1 // loop_header_branch
      %23 = sbr.rel (%p21) target = $region8
    $region5: #{tpu_custom_call.1} parent=1 // loop_body
      %s25 = ssub.s32 %s20, 1
      %s26 = ssub.s32 %s20, 2
      %s27 = sadd.s32 %s20, 1
      %s28 = ssub.s32 %s20, %s27
      %p29 = scmp.eq.s32.totalorder %s28, 0
      %s31 = sadd.s32 %s30, 1
      %s32 = scalar_select %p29, %s30, %s31
      %p35 = pneg %p29
      %p36 = scmp.eq.s32.totalorder %s20, 1
      %p37 = por %p35, %p36
      %p38 = scmp.ne.s32.totalorder %s30, %s33
      %p39 = scmp.eq.s32.totalorder %s20, 0
      %p40 = por %p38, %p39
      %p41 = scmp.ne.s32.totalorder %s30, %s33
      %p42 = scmp.eq.s32.totalorder %s25, 1
      %p43 = por %p41, %p42
      %p44 = scmp.ne.s32.totalorder %s33, %s34
      %p45 = scmp.eq.s32.totalorder %s25, 0
      %p46 = por %p44, %p45
      %p47 = scmp.ne.s32.totalorder %s33, %s34
      %p48 = scmp.eq.s32.totalorder %s26, 1
      %p49 = por %p47, %p48
      %p51 = scmp.ne.s32.totalorder %s34, %s50
      %p52 = scmp.eq.s32.totalorder %s26, 0
      %p53 = por %p51, %p52
      %s55 = sadd.s32 %s54, 1
      %p58 = scmp.eq.s32.totalorder %s20, 1
      %p59 = scmp.ne.s32.totalorder %s54, %s56
      %p60 = scmp.eq.s32.totalorder %s20, 0
      %p61 = por %p59, %p60
      %p62 = scmp.ne.s32.totalorder %s54, %s56
      %p63 = scmp.eq.s32.totalorder %s25, 1
      %p64 = por %p62, %p63
      %p65 = scmp.ne.s32.totalorder %s56, %s57
      %p66 = scmp.eq.s32.totalorder %s25, 0
      %p67 = por %p65, %p66
      %p68 = scmp.ne.s32.totalorder %s56, %s57
      %p69 = scmp.eq.s32.totalorder %s26, 1
      %p70 = por %p68, %p69
      %p72 = scmp.ne.s32.totalorder %s57, %s71
      %p73 = scmp.eq.s32.totalorder %s26, 0
      %p74 = por %p72, %p73
      %s76 = sadd.s32 %s75, 1
      %p79 = scmp.eq.s32.totalorder %s20, 1
      %p80 = scmp.ne.s32.totalorder %s75, %s77
      %p81 = scmp.eq.s32.totalorder %s20, 0
      %p82 = por %p80, %p81
      %p83 = scmp.ne.s32.totalorder %s75, %s77
      %p84 = scmp.eq.s32.totalorder %s25, 1
      %p85 = por %p83, %p84
      %p86 = scmp.ne.s32.totalorder %s77, %s78
      %p87 = scmp.eq.s32.totalorder %s25, 0
      %p88 = por %p86, %p87
      %p89 = scmp.ne.s32.totalorder %s77, %s78
      %p90 = scmp.eq.s32.totalorder %s26, 1
      %p91 = por %p89, %p90
      %p93 = scmp.ne.s32.totalorder %s78, %s92
      %p94 = scmp.eq.s32.totalorder %s26, 0
      %p95 = por %p93, %p94
      %s97 = sadd.s32 %s96, 1
      %p100 = scmp.eq.s32.totalorder %s20, 1
      %p101 = scmp.ne.s32.totalorder %s96, %s98
      %p102 = scmp.eq.s32.totalorder %s20, 0
      %p103 = por %p101, %p102
      %p104 = scmp.ne.s32.totalorder %s96, %s98
      %p105 = scmp.eq.s32.totalorder %s25, 1
      %p106 = por %p104, %p105
      %p107 = scmp.ne.s32.totalorder %s98, %s99
      %p108 = scmp.eq.s32.totalorder %s25, 0
      %p109 = por %p107, %p108
      %p110 = scmp.ne.s32.totalorder %s98, %s99
      %p111 = scmp.eq.s32.totalorder %s26, 1
      %p112 = por %p110, %p111
      %p114 = scmp.ne.s32.totalorder %s99, %s113
      %p115 = scmp.eq.s32.totalorder %s26, 0
      %p116 = por %p114, %p115
      %s118 = sadd.s32 %s117, 1
      %p121 = scmp.eq.s32.totalorder %s20, 1
      %p122 = scmp.ne.s32.totalorder %s117, %s119
      %p123 = scmp.eq.s32.totalorder %s20, 0
      %p124 = por %p122, %p123
      %p125 = scmp.ne.s32.totalorder %s117, %s119
      %p126 = scmp.eq.s32.totalorder %s25, 1
      %p127 = por %p125, %p126
      %p128 = scmp.ne.s32.totalorder %s119, %s120
      %p129 = scmp.eq.s32.totalorder %s25, 0
      %p130 = por %p128, %p129
      %p131 = scmp.ne.s32.totalorder %s119, %s120
      %p132 = scmp.eq.s32.totalorder %s26, 1
      %p133 = por %p131, %p132
      %p135 = scmp.ne.s32.totalorder %s120, %s134
      %p136 = scmp.eq.s32.totalorder %s26, 0
      %p137 = por %p135, %p136
      %s139 = sadd.s32 %s138, 1
      %p142 = scmp.eq.s32.totalorder %s20, 1
      %p143 = scmp.ne.s32.totalorder %s138, %s140
      %p144 = scmp.eq.s32.totalorder %s20, 0
      %p145 = por %p143, %p144
      %p146 = scmp.ne.s32.totalorder %s138, %s140
      %p147 = scmp.eq.s32.totalorder %s25, 1
      %p148 = por %p146, %p147
      %p149 = scmp.ne.s32.totalorder %s140, %s141
      %p150 = scmp.eq.s32.totalorder %s25, 0
      %p151 = por %p149, %p150
      %p152 = scmp.ne.s32.totalorder %s140, %s141
      %p153 = scmp.eq.s32.totalorder %s26, 1
      %p154 = por %p152, %p153
      %p156 = scmp.ne.s32.totalorder %s141, %s155
      %p157 = scmp.eq.s32.totalorder %s26, 0
      %p158 = por %p156, %p157
      %s160 = sadd.s32 %s159, 1
      %p163 = scmp.eq.s32.totalorder %s20, 1
      %p164 = scmp.ne.s32.totalorder %s159, %s161
      %p165 = scmp.eq.s32.totalorder %s20, 0
      %p166 = por %p164, %p165
      %p167 = scmp.ne.s32.totalorder %s159, %s161
      %p168 = scmp.eq.s32.totalorder %s25, 1
      %p169 = por %p167, %p168
      %p170 = scmp.ne.s32.totalorder %s161, %s162
      %p171 = scmp.eq.s32.totalorder %s25, 0
      %p172 = por %p170, %p171
      %p173 = scmp.ne.s32.totalorder %s161, %s162
      %p174 = scmp.eq.s32.totalorder %s26, 1
      %p175 = por %p173, %p174
      %p177 = scmp.ne.s32.totalorder %s162, %s176
      %p178 = scmp.eq.s32.totalorder %s26, 0
      %p179 = por %p177, %p178
      %s181 = sadd.s32 %s180, 1
      %p184 = scmp.eq.s32.totalorder %s20, 1
      %p185 = scmp.ne.s32.totalorder %s180, %s182
      %p186 = scmp.eq.s32.totalorder %s20, 0
      %p187 = por %p185, %p186
      %p188 = scmp.ne.s32.totalorder %s180, %s182
      %p189 = scmp.eq.s32.totalorder %s25, 1
      %p190 = por %p188, %p189
      %p191 = scmp.ne.s32.totalorder %s182, %s183
      %p192 = scmp.eq.s32.totalorder %s25, 0
      %p193 = por %p191, %p192
      %p194 = scmp.ne.s32.totalorder %s182, %s183
      %p195 = scmp.eq.s32.totalorder %s26, 1
      %p196 = por %p194, %p195
      %p198 = scmp.ne.s32.totalorder %s183, %s197
      %p199 = scmp.eq.s32.totalorder %s26, 0
      %p200 = por %p198, %p199
      %s202 = sadd.s32 %s201, 1
      %p205 = scmp.eq.s32.totalorder %s20, 1
      %p206 = scmp.ne.s32.totalorder %s201, %s203
      %p207 = scmp.eq.s32.totalorder %s20, 0
      %p208 = por %p206, %p207
      %p209 = scmp.ne.s32.totalorder %s201, %s203
      %p210 = scmp.eq.s32.totalorder %s25, 1
      %p211 = por %p209, %p210
      %p212 = scmp.ne.s32.totalorder %s203, %s204
      %p213 = scmp.eq.s32.totalorder %s25, 0
      %p214 = por %p212, %p213
      %p215 = scmp.ne.s32.totalorder %s203, %s204
      %p216 = scmp.eq.s32.totalorder %s26, 1
      %p217 = por %p215, %p216
      %p219 = scmp.ne.s32.totalorder %s204, %s218
      %p220 = scmp.eq.s32.totalorder %s26, 0
      %p221 = por %p219, %p220
      %s222 = ssub.s32 %s20, %s27
      %p223 = scmp.eq.s32.totalorder %s222, 0
      %s225 = sadd.s32 %s224, 1
      %s226 = scalar_select %p223, %s224, %s225
      %p229 = pneg %p223
      %p230 = scmp.eq.s32.totalorder %s20, 1
      %p231 = por %p229, %p230
      %p232 = scmp.ne.s32.totalorder %s224, %s227
      %p233 = scmp.eq.s32.totalorder %s20, 0
      %p234 = por %p232, %p233
      %p235 = scmp.ne.s32.totalorder %s224, %s227
      %p236 = scmp.eq.s32.totalorder %s25, 1
      %p237 = por %p235, %p236
      %p238 = scmp.ne.s32.totalorder %s227, %s228
      %p239 = scmp.eq.s32.totalorder %s25, 0
      %p240 = por %p238, %p239
      %p241 = scmp.ne.s32.totalorder %s227, %s228
      %p242 = scmp.eq.s32.totalorder %s26, 1
      %p243 = por %p241, %p242
      %p245 = scmp.ne.s32.totalorder %s228, %s244
      %p246 = scmp.eq.s32.totalorder %s26, 0
      %p247 = por %p245, %p246
      %p248 = scmp.le.s32.totalorder 1, %s20
      %p249 = scmp.lt.s32.totalorder %s20, 3
      %p250 = pnand %p248, %p249
      %p251 = pneg %p250
      // Predicated region
      $region9: #{tpu_custom_call.1} parent=5 // pred_check
        _
      $region10: #{tpu_custom_call.1} parent=5 // pred_check_branch
        %253 = sbr.rel (%p250) target = $region12
      $region11: #{tpu_custom_call.1} parent=5 // pred_region
        %s254 = ssub.s32 %s20, 1
        // Predicated region
        $region13: #{tpu_custom_call.1} parent=11 // pred_check
          %p255 = pneg %p67
        $region14: #{tpu_custom_call.1} parent=11 // pred_check_branch
          %257 = sbr.rel (%p255) target = $region16
        $region15: #{tpu_custom_call.1} parent=11 // pred_region
          _
        $region16: #{tpu_custom_call.1} parent=11 // pred_fallthru
          _
        // Predicated region
        $region17: #{tpu_custom_call.1} parent=11 // pred_check
          %p258 = pneg %p88
        $region18: #{tpu_custom_call.1} parent=11 // pred_check_branch
          %260 = sbr.rel (%p258) target = $region20
        $region19: #{tpu_custom_call.1} parent=11 // pred_region
          _
        $region20: #{tpu_custom_call.1} parent=11 // pred_fallthru
          _
        // Predicated region
        $region21: #{tpu_custom_call.1} parent=11 // pred_check
          %p261 = pneg %p109
        $region22: #{tpu_custom_call.1} parent=11 // pred_check_branch
          %263 = sbr.rel (%p261) target = $region24
        $region23: #{tpu_custom_call.1} parent=11 // pred_region
          _
        $region24: #{tpu_custom_call.1} parent=11 // pred_fallthru
          _
        // Predicated region
        $region25: #{tpu_custom_call.1} parent=11 // pred_check
          %p264 = pneg %p130
        $region26: #{tpu_custom_call.1} parent=11 // pred_check_branch
          %266 = sbr.rel (%p264) target = $region28
        $region27: #{tpu_custom_call.1} parent=11 // pred_region
          _
        $region28: #{tpu_custom_call.1} parent=11 // pred_fallthru
          _
        // Predicated region
        $region29: #{tpu_custom_call.1} parent=11 // pred_check
          %p267 = pneg %p151
        $region30: #{tpu_custom_call.1} parent=11 // pred_check_branch
          %269 = sbr.rel (%p267) target = $region32
        $region31: #{tpu_custom_call.1} parent=11 // pred_region
          %s271 = ssub.s32 1536, 1536
          %272 = vsyncadd [#allocation3], %s271
          %s273 = sshll.u32 [#allocation2], 4
          %s274 = int_to_ptr.vmem [resolvable:$true] %s273
          %279 = dma.hbm_to_vmem [thread:$0]  %s5, 1536, %s274, [#allocation3], 384, 384, 24
        $region32: #{tpu_custom_call.1} parent=11 // pred_fallthru
          _
        // Predicated region
        $region33: #{tpu_custom_call.1} parent=11 // pred_check
          %p280 = pneg %p172
        $region34: #{tpu_custom_call.1} parent=11 // pred_check_branch
          %282 = sbr.rel (%p280) target = $region36
        $region35: #{tpu_custom_call.1} parent=11 // pred_region
          _
        $region36: #{tpu_custom_call.1} parent=11 // pred_fallthru
          _
        // Predicated region
        $region37: #{tpu_custom_call.1} parent=11 // pred_check
          %p283 = pneg %p193
        $region38: #{tpu_custom_call.1} parent=11 // pred_check_branch
          %285 = sbr.rel (%p283) target = $region40
        $region39: #{tpu_custom_call.1} parent=11 // pred_region
          _
        $region40: #{tpu_custom_call.1} parent=11 // pred_fallthru
          _
        // Predicated region
        $region41: #{tpu_custom_call.1} parent=11 // pred_check
          %p286 = pneg %p214
        $region42: #{tpu_custom_call.1} parent=11 // pred_check_branch
          %288 = sbr.rel (%p286) target = $region44
        $region43: #{tpu_custom_call.1} parent=11 // pred_region
          %s290 = ssub.s32 2048, 2048
          %291 = vsyncadd [#allocation6], %s290
          %s292 = sshll.u32 [#allocation5], 4
          %s293 = int_to_ptr.vmem [resolvable:$true] %s292
          %298 = dma.hbm_to_vmem [thread:$0]  %s8, 2048, %s293, [#allocation6], 128, 128, 8
        $region44: #{tpu_custom_call.1} parent=11 // pred_fallthru
          _
      $region12: #{tpu_custom_call.1} parent=5 // pred_fallthru
        _
      %p299 = scmp.lt.s32.totalorder %s20, 2
      // Predicated region
      $region45: #{tpu_custom_call.1} parent=5 // pred_check
        %p300 = pneg %p299
      $region46: #{tpu_custom_call.1} parent=5 // pred_check_branch
        %302 = sbr.rel (%p300) target = $region48
      $region47: #{tpu_custom_call.1} parent=5 // pred_region
        // Predicated region
        $region49: #{tpu_custom_call.1} parent=47 // pred_check
          %p303 = pneg %p40
        $region50: #{tpu_custom_call.1} parent=47 // pred_check_branch
          %305 = sbr.rel (%p303) target = $region52
        $region51: #{tpu_custom_call.1} parent=47 // pred_region
          %s306 = smul.u32 4, %s20
          %p307 = scmp.lt.s32.totalorder %s306, 7
          %s308 = scalar_select %p307, %s306, 7
          %s309 = smul.addr %s308, 8
          %s310 = scalar_lea.vmem %s0, %s309
          %s311 = smul.u32 4, %s20
        $region52: #{tpu_custom_call.1} parent=47 // pred_fallthru
          _
      $region48: #{tpu_custom_call.1} parent=5 // pred_fallthru
        _
      %p312 = scmp.le.s32.totalorder 1, %s20
      %p313 = scmp.lt.s32.totalorder %s20, 3
      %p314 = pnand %p312, %p313
      %p315 = pneg %p314
      // Predicated region
      $region53: #{tpu_custom_call.1} parent=5 // pred_check
        _
      $region54: #{tpu_custom_call.1} parent=5 // pred_check_branch
        %317 = sbr.rel (%p314) target = $region56
      $region55: #{tpu_custom_call.1} parent=5 // pred_region
        %s318 = ssub.s32 %s20, 1
        // Predicated region
        $region57: #{tpu_custom_call.1} parent=55 // pred_check
          %p319 = pneg %p151
        $region58: #{tpu_custom_call.1} parent=55 // pred_check_branch
          %321 = sbr.rel (%p319) target = $region60
        $region59: #{tpu_custom_call.1} parent=55 // pred_region
          %322 = dma.done [#allocation3], 1536
        $region60: #{tpu_custom_call.1} parent=55 // pred_fallthru
          _
        // Predicated region
        $region61: #{tpu_custom_call.1} parent=55 // pred_check
          %p323 = pneg %p214
        $region62: #{tpu_custom_call.1} parent=55 // pred_check_branch
          %325 = sbr.rel (%p323) target = $region64
        $region63: #{tpu_custom_call.1} parent=55 // pred_region
          %326 = dma.done [#allocation6], 2048
        $region64: #{tpu_custom_call.1} parent=55 // pred_fallthru
          _
        %s327 = smul.u32 4, %s25
        %p328 = scmp.lt.s32.totalorder %s327, 7
        %s329 = scalar_select %p328, %s327, 7
        %s330 = smul.addr %s329, 8
        %s331 = scalar_lea.vmem %s0, %s330
        %p332 = pneg %p46
        %p333 = pneg %p43
        %p334 = pneg %p67
        %p335 = pneg %p64
        %p336 = pneg %p88
        %p337 = pneg %p85
        %p338 = pneg %p109
        %p339 = pneg %p106
        %p340 = pneg %p130
        %p341 = pneg %p127
        %p342 = pneg %p151
        %p343 = pneg %p148
        %p344 = pneg %p172
        %p345 = pneg %p169
        %p346 = pneg %p193
        %p347 = pneg %p190
        %p348 = pneg %p214
        %p349 = pneg %p211
        %p350 = pneg %p240
        %p351 = pneg %p237
        %s352 = sand.u32 %s227, 1
        %s353 = scalar_lea.sflag [#allocation4], %s352
        %s354 = sand.u32 %s227, 1
        %s355 = smul.addr %s354, 96
        %s356 = scalar_lea.vmem [#allocation7], %s355
        %s357 = smul.u32 4, %s25
        %p358 = scmp.lt.s32.totalorder %s357, 7
        %s359 = scalar_select %p358, %s357, 7
        %s360 = smul.addr %s359, 8
        %s361 = scalar_lea.vmem %s0, %s360
        %s362 = smul.u32 4, %s25
        %s363 = smul.u32 4, %s25
        %v364 = vld [vmem:[%s361] sm:$0xff]
        %v365 = vld [vmem:[%s361 + $0x8] sm:$0xff]
        %v366 = vld [vmem:[%s361 + $0x10] sm:$0xff]
        %v367 = vld [vmem:[%s361 + $0x18] sm:$0xff]
        %v368 = vld [vmem:[%s1] sm:$0xff]
        %v369 = vld [vmem:[%s2] sm:$0x1]
        %v371 = vlaneseq
        %v372 = vshrl.u32 %v371, 7
        %v373 = vsub.s32 0, %v372
        %v374 = vrot.slane %v369, %v373
        %vm376 = vcmask 64512
        %v378 = vsel %vm376, %v364, 0
        %v381 = vsel %vm376, %v365, 0
        %v384 = vsel %vm376, %v366, 0
        %v387 = vsel %vm376, %v367, 0
        %389 = vmatprep.subr.mxu0 0.0
        %390 = vmatpush1.msra.mxu0 %v368
        %391 = vmatprep.subr.mxu0 0.0
        %392 = vmatpush1.msra.mxu0 0.0
        %393 = vmatprep.subr.mxu0 0.0
        %394 = vmatpush1.msra.mxu0 0.0
        %395 = vmatprep.subr.mxu0 0.0
        %396 = vmatpush1.msra.mxu0 0.0
        %397 = vmatprep.subr.mxu0 0.0
        %398 = vmatpush1.msra.mxu0 0.0
        %399 = vmatprep.subr.mxu0 0.0
        %400 = vmatpush1.msra.mxu0 0.0
        %401 = vmatprep.subr.mxu0 0.0
        %402 = vmatpush1.msra.mxu0 0.0
        %403 = vmatprep.subr.mxu0 0.0
        %404 = vmatpush1.msra.mxu0 0.0
        %405 = vmatprep.subr.mxu0 0.0
        %406 = vmatpush1.msra.mxu0 0.0
        %407 = vmatprep.subr.mxu0 0.0
        %408 = vmatpush1.msra.mxu0 0.0
        %409 = vmatprep.subr.mxu0 0.0
        %410 = vmatpush1.msra.mxu0 0.0
        %411 = vmatprep.subr.mxu0 0.0
        %412 = vmatpush1.msra.mxu0 0.0
        %413 = vmatprep.subr.mxu0 0.0
        %414 = vmatpush1.msra.mxu0 0.0
        %415 = vmatprep.subr.mxu0 0.0
        %416 = vmatpush1.msra.mxu0 0.0
        %417 = vmatprep.subr.mxu0 0.0
        %418 = vmatpush1.msra.mxu0 0.0
        %419 = vmatprep.subr.mxu0 0.0
        %420 = vmatpush1.msra.mxu0 0.0
        %421 = vmatprep.subr.mxu0 0.0
        %422 = vmatpush1.msra.mxu0 0.0
        %423 = vmatprep.subr.mxu0 0.0
        %424 = vmatpush1.msra.mxu0 0.0
        %425 = vmatprep.subr.mxu0 0.0
        %426 = vmatpush1.msra.mxu0 0.0
        %427 = vmatprep.subr.mxu0 0.0
        %428 = vmatpush1.msra.mxu0 0.0
        %429 = vmatprep.subr.mxu0 0.0
        %430 = vmatpush1.msra.mxu0 0.0
        %431 = vmatprep.subr.mxu0 0.0
        %432 = vmatpush1.msra.mxu0 0.0
        %433 = vmatprep.subr.mxu0 0.0
        %434 = vmatpush1.msra.mxu0 0.0
        %435 = vmatprep.subr.mxu0 0.0
        %436 = vmatpush1.msra.mxu0 0.0
        %437 = vmatprep.subr.mxu0 0.0
        %438 = vmatpush1.msra.mxu0 0.0
        %439 = vmatprep.subr.mxu0 0.0
        %440 = vmatpush1.msra.mxu0 0.0
        %441 = vmatprep.subr.mxu0 0.0
        %442 = vmatpush1.msra.mxu0 0.0
        %443 = vmatprep.subr.mxu0 0.0
        %444 = vmatpush1.msra.mxu0 0.0
        %445 = vmatprep.subr.mxu0 0.0
        %446 = vmatpush1.msra.mxu0 0.0
        %447 = vmatprep.subr.mxu0 0.0
        %448 = vmatpush1.msra.mxu0 0.0
        %449 = vmatprep.subr.mxu0 0.0
        %450 = vmatpush1.msra.mxu0 0.0
        %451 = vmatprep.subr.mxu0 0.0
        %452 = vmatpush1.msra.mxu0 0.0
        %453 = vmatprep.mubr.f32.mxu0 0.0
        %454 = vmatmul.mubr.f32.gmra.mrb[0].mxu0 %v378
        %v455 = vpop.f32.mrb[0].mxu0
        %v456 = vadd.f32 %v374, %v455
        %v457 = vpop.f32.mrb[0].mxu0
        %458 = vmatprep.mubr.f32.mxu0 0.0
        %459 = vmatmul.mubr.f32.gmra.mrb[0].mxu0 %v381
        %v460 = vpop.f32.mrb[0].mxu0
        %v461 = vadd.f32 %v374, %v460
        %v462 = vpop.f32.mrb[0].mxu0
        %463 = vmatprep.mubr.f32.mxu0 0.0
        %464 = vmatmul.mubr.f32.gmra.mrb[0].mxu0 %v384
        %v465 = vpop.f32.mrb[0].mxu0
        %v466 = vadd.f32 %v374, %v465
        %v467 = vpop.f32.mrb[0].mxu0
        %468 = vmatprep.mubr.f32.mxu0 0.0
        %469 = vmatmul.mubr.f32.gmra.mrb[0].mxu0 %v387
        %v470 = vpop.f32.mrb[0].mxu0
        %v471 = vadd.f32 %v374, %v470
        %v472 = vpop.f32.mrb[0].mxu0
        %473 = vdwg.mxu0
        %v474 = vmax.f32 %v456, 0.0
        %v475 = vmax.f32 %v461, 0.0
        %v476 = vmax.f32 %v466, 0.0
        %v477 = vmax.f32 %v471, 0.0
        %v478 = vld [vmem:[%s3] sm:$0xff]
        %v479 = vld [vmem:[%s3 + $0x8] sm:$0xff]
        %v480 = vld [vmem:[%s3 + $0x10] sm:$0xff]
        %v481 = vld [vmem:[%s3 + $0x18] sm:$0xff]
        %v482 = vld [vmem:[%s4] sm:$0x1]
        %v484 = vlaneseq
        %v485 = vshrl.u32 %v484, 7
        %v486 = vsub.s32 0, %v485
        %v487 = vrot.slane %v482, %v486
        %vm489 = vcmask 261120
        %v491 = vsel %vm489, %v474, 0
        %v494 = vsel %vm489, %v475, 0
        %v497 = vsel %vm489, %v476, 0
        %v500 = vsel %vm489, %v477, 0
        %502 = vmatprep.subr.mxu0 0.0
        %503 = vmatpush1.msra.mxu0 %v478
        %504 = vmatprep.subr.mxu0 0.0
        %505 = vmatpush1.msra.mxu0 %v479
        %506 = vmatprep.subr.mxu0 0.0
        %507 = vmatpush1.msra.mxu0 %v480
        %508 = vmatprep.subr.mxu0 0.0
        %509 = vmatpush1.msra.mxu0 %v481
        %510 = vmatprep.subr.mxu0 0.0
        %511 = vmatpush1.msra.mxu0 0.0
        %512 = vmatprep.subr.mxu0 0.0
        %513 = vmatpush1.msra.mxu0 0.0
        %514 = vmatprep.subr.mxu0 0.0
        %515 = vmatpush1.msra.mxu0 0.0
        %516 = vmatprep.subr.mxu0 0.0
        %517 = vmatpush1.msra.mxu0 0.0
        %518 = vmatprep.subr.mxu0 0.0
        %519 = vmatpush1.msra.mxu0 0.0
        %520 = vmatprep.subr.mxu0 0.0
        %521 = vmatpush1.msra.mxu0 0.0
        %522 = vmatprep.subr.mxu0 0.0
        %523 = vmatpush1.msra.mxu0 0.0
        %524 = vmatprep.subr.mxu0 0.0
        %525 = vmatpush1.msra.mxu0 0.0
        %526 = vmatprep.subr.mxu0 0.0
        %527 = vmatpush1.msra.mxu0 0.0
        %528 = vmatprep.subr.mxu0 0.0
        %529 = vmatpush1.msra.mxu0 0.0
        %530 = vmatprep.subr.mxu0 0.0
        %531 = vmatpush1.msra.mxu0 0.0
        %532 = vmatprep.subr.mxu0 0.0
        %533 = vmatpush1.msra.mxu0 0.0
        %534 = vmatprep.subr.mxu0 0.0
        %535 = vmatpush1.msra.mxu0 0.0
        %536 = vmatprep.subr.mxu0 0.0
        %537 = vmatpush1.msra.mxu0 0.0
        %538 = vmatprep.subr.mxu0 0.0
        %539 = vmatpush1.msra.mxu0 0.0
        %540 = vmatprep.subr.mxu0 0.0
        %541 = vmatpush1.msra.mxu0 0.0
        %542 = vmatprep.subr.mxu0 0.0
        %543 = vmatpush1.msra.mxu0 0.0
        %544 = vmatprep.subr.mxu0 0.0
        %545 = vmatpush1.msra.mxu0 0.0
        %546 = vmatprep.subr.mxu0 0.0
        %547 = vmatpush1.msra.mxu0 0.0
        %548 = vmatprep.subr.mxu0 0.0
        %549 = vmatpush1.msra.mxu0 0.0
        %550 = vmatprep.subr.mxu0 0.0
        %551 = vmatpush1.msra.mxu0 0.0
        %552 = vmatprep.subr.mxu0 0.0
        %553 = vmatpush1.msra.mxu0 0.0
        %554 = vmatprep.subr.mxu0 0.0
        %555 = vmatpush1.msra.mxu0 0.0
        %556 = vmatprep.subr.mxu0 0.0
        %557 = vmatpush1.msra.mxu0 0.0
        %558 = vmatprep.subr.mxu0 0.0
        %559 = vmatpush1.msra.mxu0 0.0
        %560 = vmatprep.subr.mxu0 0.0
        %561 = vmatpush1.msra.mxu0 0.0
        %562 = vmatprep.subr.mxu0 0.0
        %563 = vmatpush1.msra.mxu0 0.0
        %564 = vmatprep.subr.mxu0 0.0
        %565 = vmatpush1.msra.mxu0 0.0
        %566 = vmatprep.mubr.f32.mxu0 0.0
        %567 = vmatmul.mubr.f32.gmra.mrb[0].mxu0 %v491
        %v568 = vpop.f32.mrb[0].mxu0
        %v569 = vadd.f32 %v487, %v568
        %v570 = vpop.f32.mrb[0].mxu0
        %571 = vmatprep.mubr.f32.mxu0 0.0
        %572 = vmatmul.mubr.f32.gmra.mrb[0].mxu0 %v494
        %v573 = vpop.f32.mrb[0].mxu0
        %v574 = vadd.f32 %v487, %v573
        %v575 = vpop.f32.mrb[0].mxu0
        %576 = vmatprep.mubr.f32.mxu0 0.0
        %577 = vmatmul.mubr.f32.gmra.mrb[0].mxu0 %v497
        %v578 = vpop.f32.mrb[0].mxu0
        %v579 = vadd.f32 %v487, %v578
        %v580 = vpop.f32.mrb[0].mxu0
        %581 = vmatprep.mubr.f32.mxu0 0.0
        %582 = vmatmul.mubr.f32.gmra.mrb[0].mxu0 %v500
        %v583 = vpop.f32.mrb[0].mxu0
        %v584 = vadd.f32 %v487, %v583
        %v585 = vpop.f32.mrb[0].mxu0
        %586 = vdwg.mxu0
        %v587 = vmax.f32 %v569, 0.0
        %v588 = vmax.f32 %v574, 0.0
        %v589 = vmax.f32 %v579, 0.0
        %v590 = vmax.f32 %v584, 0.0
        %v591 = vld [vmem:[#allocation2] sm:$0xff]
        %v592 = vld [vmem:[#allocation2 + $0x8] sm:$0xff]
        %v593 = vld [vmem:[#allocation2 + $0x10] sm:$0xff]
        %v594 = vld [vmem:[#allocation2 + $0x18] sm:$0xff]
        %v595 = vld [vmem:[#allocation2 + $0x20] sm:$0xff]
        %v596 = vld [vmem:[#allocation2 + $0x28] sm:$0xff]
        %v597 = vld [vmem:[#allocation2 + $0x30] sm:$0xff]
        %v598 = vld [vmem:[#allocation2 + $0x38] sm:$0xff]
        %v599 = vld [vmem:[#allocation2 + $0x40] sm:$0xff]
        %v600 = vld [vmem:[#allocation2 + $0x48] sm:$0xff]
        %v601 = vld [vmem:[#allocation2 + $0x50] sm:$0xff]
        %v602 = vld [vmem:[#allocation2 + $0x58] sm:$0xff]
        %v603 = vld [vmem:[%s6] sm:$0xff]
        %v604 = vld [vmem:[%s6 + $0x8] sm:$0xff]
        %v605 = vld [vmem:[%s6 + $0x10] sm:$0xff]
        %606 = vmatprep.subr.mxu0 %v604
        %607 = vmatpush1.msra.mxu0 %v603
        %608 = vmatprep.subr.mxu0 0.0
        %609 = vmatpush1.msra.mxu0 0.0
        %610 = vmatprep.subr.mxu0 0.0
        %611 = vmatpush1.msra.mxu0 0.0
        %612 = vmatprep.subr.mxu0 0.0
        %613 = vmatpush1.msra.mxu0 0.0
        %614 = vmatprep.subr.mxu0 0.0
        %615 = vmatpush1.msra.mxu0 0.0
        %616 = vmatprep.subr.mxu0 0.0
        %617 = vmatpush1.msra.mxu0 0.0
        %618 = vmatprep.subr.mxu0 0.0
        %619 = vmatpush1.msra.mxu0 0.0
        %620 = vmatprep.subr.mxu0 0.0
        %621 = vmatpush1.msra.mxu0 0.0
        %622 = vmatprep.subr.mxu0 0.0
        %623 = vmatpush1.msra.mxu0 0.0
        %624 = vmatprep.subr.mxu0 0.0
        %625 = vmatpush1.msra.mxu0 0.0
        %626 = vmatprep.subr.mxu0 0.0
        %627 = vmatpush1.msra.mxu0 0.0
        %628 = vmatprep.subr.mxu0 0.0
        %629 = vmatpush1.msra.mxu0 0.0
        %630 = vmatprep.subr.mxu0 0.0
        %631 = vmatpush1.msra.mxu0 0.0
        %632 = vmatprep.subr.mxu0 0.0
        %633 = vmatpush1.msra.mxu0 0.0
        %634 = vmatprep.subr.mxu0 0.0
        %635 = vmatpush1.msra.mxu0 0.0
        %636 = vmatprep.subr.mxu0 0.0
        %637 = vmatpush1.msra.mxu0 0.0
        %638 = vmatprep.subr.mxu0 0.0
        %639 = vmatpush1.msra.mxu0 0.0
        %640 = vmatprep.subr.mxu0 0.0
        %641 = vmatpush1.msra.mxu0 0.0
        %642 = vmatprep.subr.mxu0 0.0
        %643 = vmatpush1.msra.mxu0 0.0
        %644 = vmatprep.subr.mxu0 0.0
        %645 = vmatpush1.msra.mxu0 0.0
        %646 = vmatprep.subr.mxu0 0.0
        %647 = vmatpush1.msra.mxu0 0.0
        %648 = vmatprep.subr.mxu0 0.0
        %649 = vmatpush1.msra.mxu0 0.0
        %650 = vmatprep.subr.mxu0 0.0
        %651 = vmatpush1.msra.mxu0 0.0
        %652 = vmatprep.subr.mxu0 0.0
        %653 = vmatpush1.msra.mxu0 0.0
        %654 = vmatprep.subr.mxu0 0.0
        %655 = vmatpush1.msra.mxu0 0.0
        %656 = vmatprep.subr.mxu0 0.0
        %657 = vmatpush1.msra.mxu0 0.0
        %658 = vmatprep.subr.mxu0 0.0
        %659 = vmatpush1.msra.mxu0 0.0
        %660 = vmatprep.subr.mxu0 0.0
        %661 = vmatpush1.msra.mxu0 0.0
        %662 = vmatprep.subr.mxu0 0.0
        %663 = vmatpush1.msra.mxu0 0.0
        %664 = vmatprep.subr.mxu0 0.0
        %665 = vmatpush1.msra.mxu0 0.0
        %666 = vmatprep.subr.mxu0 0.0
        %667 = vmatpush1.msra.mxu0 0.0
        %668 = vmatprep.subr.mxu0 0.0
        %669 = vmatpush1.msra.mxu0 0.0
        %670 = vmatprep.mubr.f32.mxu0 0.0
        %671 = vmatmul.mubr.f32.gmra.mrb[0].mxu0 %v378
        %v672 = vpop.f32.mrb[0].mxu0
        %v673 = vadd.f32 0.0, %v672
        %v674 = vpop.f32.mrb[0].mxu0
        %v675 = vadd.f32 0.0, %v674
        %676 = vmatprep.mubr.f32.mxu0 0.0
        %677 = vmatmul.mubr.f32.gmra.mrb[0].mxu0 %v381
        %v678 = vpop.f32.mrb[0].mxu0
        %v679 = vadd.f32 0.0, %v678
        %v680 = vpop.f32.mrb[0].mxu0
        %v681 = vadd.f32 0.0, %v680
        %682 = vmatprep.mubr.f32.mxu0 0.0
        %683 = vmatmul.mubr.f32.gmra.mrb[0].mxu0 %v384
        %v684 = vpop.f32.mrb[0].mxu0
        %v685 = vadd.f32 0.0, %v684
        %v686 = vpop.f32.mrb[0].mxu0
        %v687 = vadd.f32 0.0, %v686
        %688 = vmatprep.mubr.f32.mxu0 0.0
        %689 = vmatmul.mubr.f32.gmra.mrb[0].mxu0 %v387
        %v690 = vpop.f32.mrb[0].mxu0
        %v691 = vadd.f32 0.0, %v690
        %v692 = vpop.f32.mrb[0].mxu0
        %v693 = vadd.f32 0.0, %v692
        %694 = vdwg.mxu0
        %695 = vmatprep.subr.mxu0 0.0
        %696 = vmatpush1.msra.mxu0 %v605
        %697 = vmatprep.subr.mxu0 0.0
        %698 = vmatpush1.msra.mxu0 0.0
        %699 = vmatprep.subr.mxu0 0.0
        %700 = vmatpush1.msra.mxu0 0.0
        %701 = vmatprep.subr.mxu0 0.0
        %702 = vmatpush1.msra.mxu0 0.0
        %703 = vmatprep.subr.mxu0 0.0
        %704 = vmatpush1.msra.mxu0 0.0
        %705 = vmatprep.subr.mxu0 0.0
        %706 = vmatpush1.msra.mxu0 0.0
        %707 = vmatprep.subr.mxu0 0.0
        %708 = vmatpush1.msra.mxu0 0.0
        %709 = vmatprep.subr.mxu0 0.0
        %710 = vmatpush1.msra.mxu0 0.0
        %711 = vmatprep.subr.mxu0 0.0
        %712 = vmatpush1.msra.mxu0 0.0
        %713 = vmatprep.subr.mxu0 0.0
        %714 = vmatpush1.msra.mxu0 0.0
        %715 = vmatprep.subr.mxu0 0.0
        %716 = vmatpush1.msra.mxu0 0.0
        %717 = vmatprep.subr.mxu0 0.0
        %718 = vmatpush1.msra.mxu0 0.0
        %719 = vmatprep.subr.mxu0 0.0
        %720 = vmatpush1.msra.mxu0 0.0
        %721 = vmatprep.subr.mxu0 0.0
        %722 = vmatpush1.msra.mxu0 0.0
        %723 = vmatprep.subr.mxu0 0.0
        %724 = vmatpush1.msra.mxu0 0.0
        %725 = vmatprep.subr.mxu0 0.0
        %726 = vmatpush1.msra.mxu0 0.0
        %727 = vmatprep.subr.mxu0 0.0
        %728 = vmatpush1.msra.mxu0 0.0
        %729 = vmatprep.subr.mxu0 0.0
        %730 = vmatpush1.msra.mxu0 0.0
        %731 = vmatprep.subr.mxu0 0.0
        %732 = vmatpush1.msra.mxu0 0.0
        %733 = vmatprep.subr.mxu0 0.0
        %734 = vmatpush1.msra.mxu0 0.0
        %735 = vmatprep.subr.mxu0 0.0
        %736 = vmatpush1.msra.mxu0 0.0
        %737 = vmatprep.subr.mxu0 0.0
        %738 = vmatpush1.msra.mxu0 0.0
        %739 = vmatprep.subr.mxu0 0.0
        %740 = vmatpush1.msra.mxu0 0.0
        %741 = vmatprep.subr.mxu0 0.0
        %742 = vmatpush1.msra.mxu0 0.0
        %743 = vmatprep.subr.mxu0 0.0
        %744 = vmatpush1.msra.mxu0 0.0
        %745 = vmatprep.subr.mxu0 0.0
        %746 = vmatpush1.msra.mxu0 0.0
        %747 = vmatprep.subr.mxu0 0.0
        %748 = vmatpush1.msra.mxu0 0.0
        %749 = vmatprep.subr.mxu0 0.0
        %750 = vmatpush1.msra.mxu0 0.0
        %751 = vmatprep.subr.mxu0 0.0
        %752 = vmatpush1.msra.mxu0 0.0
        %753 = vmatprep.subr.mxu0 0.0
        %754 = vmatpush1.msra.mxu0 0.0
        %755 = vmatprep.subr.mxu0 0.0
        %756 = vmatpush1.msra.mxu0 0.0
        %757 = vmatprep.subr.mxu0 0.0
        %758 = vmatpush1.msra.mxu0 0.0
        %759 = vmatprep.mubr.f32.mxu0 0.0
        %760 = vmatmul.mubr.f32.gmra.mrb[0].mxu0 %v378
        %v761 = vpop.f32.mrb[0].mxu0
        %v762 = vadd.f32 0.0, %v761
        %v763 = vpop.f32.mrb[0].mxu0
        %764 = vmatprep.mubr.f32.mxu0 0.0
        %765 = vmatmul.mubr.f32.gmra.mrb[0].mxu0 %v381
        %v766 = vpop.f32.mrb[0].mxu0
        %v767 = vadd.f32 0.0, %v766
        %v768 = vpop.f32.mrb[0].mxu0
        %769 = vmatprep.mubr.f32.mxu0 0.0
        %770 = vmatmul.mubr.f32.gmra.mrb[0].mxu0 %v384
        %v771 = vpop.f32.mrb[0].mxu0
        %v772 = vadd.f32 0.0, %v771
        %v773 = vpop.f32.mrb[0].mxu0
        %774 = vmatprep.mubr.f32.mxu0 0.0
        %775 = vmatmul.mubr.f32.gmra.mrb[0].mxu0 %v387
        %v776 = vpop.f32.mrb[0].mxu0
        %v777 = vadd.f32 0.0, %v776
        %v778 = vpop.f32.mrb[0].mxu0
        %779 = vdwg.mxu0
        %v781 = vsel %vm489, %v587, 0
        %v784 = vsel %vm489, %v588, 0
        %v787 = vsel %vm489, %v589, 0
        %v790 = vsel %vm489, %v590, 0
        %792 = vmatprep.subr.mxu0 %v592
        %793 = vmatpush1.msra.mxu0 %v591
        %794 = vmatprep.subr.mxu0 %v595
        %795 = vmatpush1.msra.mxu0 %v594
        %796 = vmatprep.subr.mxu0 %v598
        %797 = vmatpush1.msra.mxu0 %v597
        %798 = vmatprep.subr.mxu0 %v601
        %799 = vmatpush1.msra.mxu0 %v600
        %800 = vmatprep.subr.mxu0 0.0
        %801 = vmatpush1.msra.mxu0 0.0
        %802 = vmatprep.subr.mxu0 0.0
        %803 = vmatpush1.msra.mxu0 0.0
        %804 = vmatprep.subr.mxu0 0.0
        %805 = vmatpush1.msra.mxu0 0.0
        %806 = vmatprep.subr.mxu0 0.0
        %807 = vmatpush1.msra.mxu0 0.0
        %808 = vmatprep.subr.mxu0 0.0
        %809 = vmatpush1.msra.mxu0 0.0
        %810 = vmatprep.subr.mxu0 0.0
        %811 = vmatpush1.msra.mxu0 0.0
        %812 = vmatprep.subr.mxu0 0.0
        %813 = vmatpush1.msra.mxu0 0.0
        %814 = vmatprep.subr.mxu0 0.0
        %815 = vmatpush1.msra.mxu0 0.0
        %816 = vmatprep.subr.mxu0 0.0
        %817 = vmatpush1.msra.mxu0 0.0
        %818 = vmatprep.subr.mxu0 0.0
        %819 = vmatpush1.msra.mxu0 0.0
        %820 = vmatprep.subr.mxu0 0.0
        %821 = vmatpush1.msra.mxu0 0.0
        %822 = vmatprep.subr.mxu0 0.0
        %823 = vmatpush1.msra.mxu0 0.0
        %824 = vmatprep.subr.mxu0 0.0
        %825 = vmatpush1.msra.mxu0 0.0
        %826 = vmatprep.subr.mxu0 0.0
        %827 = vmatpush1.msra.mxu0 0.0
        %828 = vmatprep.subr.mxu0 0.0
        %829 = vmatpush1.msra.mxu0 0.0
        %830 = vmatprep.subr.mxu0 0.0
        %831 = vmatpush1.msra.mxu0 0.0
        %832 = vmatprep.subr.mxu0 0.0
        %833 = vmatpush1.msra.mxu0 0.0
        %834 = vmatprep.subr.mxu0 0.0
        %835 = vmatpush1.msra.mxu0 0.0
        %836 = vmatprep.subr.mxu0 0.0
        %837 = vmatpush1.msra.mxu0 0.0
        %838 = vmatprep.subr.mxu0 0.0
        %839 = vmatpush1.msra.mxu0 0.0
        %840 = vmatprep.subr.mxu0 0.0
        %841 = vmatpush1.msra.mxu0 0.0
        %842 = vmatprep.subr.mxu0 0.0
        %843 = vmatpush1.msra.mxu0 0.0
        %844 = vmatprep.subr.mxu0 0.0
        %845 = vmatpush1.msra.mxu0 0.0
        %846 = vmatprep.subr.mxu0 0.0
        %847 = vmatpush1.msra.mxu0 0.0
        %848 = vmatprep.subr.mxu0 0.0
        %849 = vmatpush1.msra.mxu0 0.0
        %850 = vmatprep.subr.mxu0 0.0
        %851 = vmatpush1.msra.mxu0 0.0
        %852 = vmatprep.subr.mxu0 0.0
        %853 = vmatpush1.msra.mxu0 0.0
        %854 = vmatprep.subr.mxu0 0.0
        %855 = vmatpush1.msra.mxu0 0.0
        %856 = vmatprep.mubr.f32.mxu0 0.0
        %857 = vmatmul.mubr.f32.gmra.mrb[0].mxu0 %v781
        %v858 = vpop.f32.mrb[0].mxu0
        %v859 = vadd.f32 %v673, %v858
        %v860 = vpop.f32.mrb[0].mxu0
        %v861 = vadd.f32 %v675, %v860
        %862 = vmatprep.mubr.f32.mxu0 0.0
        %863 = vmatmul.mubr.f32.gmra.mrb[0].mxu0 %v784
        %v864 = vpop.f32.mrb[0].mxu0
        %v865 = vadd.f32 %v679, %v864
        %v866 = vpop.f32.mrb[0].mxu0
        %v867 = vadd.f32 %v681, %v866
        %868 = vmatprep.mubr.f32.mxu0 0.0
        %869 = vmatmul.mubr.f32.gmra.mrb[0].mxu0 %v787
        %v870 = vpop.f32.mrb[0].mxu0
        %v871 = vadd.f32 %v685, %v870
        %v872 = vpop.f32.mrb[0].mxu0
        %v873 = vadd.f32 %v687, %v872
        %874 = vmatprep.mubr.f32.mxu0 0.0
        %875 = vmatmul.mubr.f32.gmra.mrb[0].mxu0 %v790
        %v876 = vpop.f32.mrb[0].mxu0
        %v877 = vadd.f32 %v691, %v876
        %v878 = vpop.f32.mrb[0].mxu0
        %v879 = vadd.f32 %v693, %v878
        %880 = vdwg.mxu0
        %881 = vmatprep.subr.mxu0 0.0
        %882 = vmatpush1.msra.mxu0 %v593
        %883 = vmatprep.subr.mxu0 0.0
        %884 = vmatpush1.msra.mxu0 %v596
        %885 = vmatprep.subr.mxu0 0.0
        %886 = vmatpush1.msra.mxu0 %v599
        %887 = vmatprep.subr.mxu0 0.0
        %888 = vmatpush1.msra.mxu0 %v602
        %889 = vmatprep.subr.mxu0 0.0
        %890 = vmatpush1.msra.mxu0 0.0
        %891 = vmatprep.subr.mxu0 0.0
        %892 = vmatpush1.msra.mxu0 0.0
        %893 = vmatprep.subr.mxu0 0.0
        %894 = vmatpush1.msra.mxu0 0.0
        %895 = vmatprep.subr.mxu0 0.0
        %896 = vmatpush1.msra.mxu0 0.0
        %897 = vmatprep.subr.mxu0 0.0
        %898 = vmatpush1.msra.mxu0 0.0
        %899 = vmatprep.subr.mxu0 0.0
        %900 = vmatpush1.msra.mxu0 0.0
        %901 = vmatprep.subr.mxu0 0.0
        %902 = vmatpush1.msra.mxu0 0.0
        %903 = vmatprep.subr.mxu0 0.0
        %904 = vmatpush1.msra.mxu0 0.0
        %905 = vmatprep.subr.mxu0 0.0
        %906 = vmatpush1.msra.mxu0 0.0
        %907 = vmatprep.subr.mxu0 0.0
        %908 = vmatpush1.msra.mxu0 0.0
        %909 = vmatprep.subr.mxu0 0.0
        %910 = vmatpush1.msra.mxu0 0.0
        %911 = vmatprep.subr.mxu0 0.0
        %912 = vmatpush1.msra.mxu0 0.0
        %913 = vmatprep.subr.mxu0 0.0
        %914 = vmatpush1.msra.mxu0 0.0
        %915 = vmatprep.subr.mxu0 0.0
        %916 = vmatpush1.msra.mxu0 0.0
        %917 = vmatprep.subr.mxu0 0.0
        %918 = vmatpush1.msra.mxu0 0.0
        %919 = vmatprep.subr.mxu0 0.0
        %920 = vmatpush1.msra.mxu0 0.0
        %921 = vmatprep.subr.mxu0 0.0
        %922 = vmatpush1.msra.mxu0 0.0
        %923 = vmatprep.subr.mxu0 0.0
        %924 = vmatpush1.msra.mxu0 0.0
        %925 = vmatprep.subr.mxu0 0.0
        %926 = vmatpush1.msra.mxu0 0.0
        %927 = vmatprep.subr.mxu0 0.0
        %928 = vmatpush1.msra.mxu0 0.0
        %929 = vmatprep.subr.mxu0 0.0
        %930 = vmatpush1.msra.mxu0 0.0
        %931 = vmatprep.subr.mxu0 0.0
        %932 = vmatpush1.msra.mxu0 0.0
        %933 = vmatprep.subr.mxu0 0.0
        %934 = vmatpush1.msra.mxu0 0.0
        %935 = vmatprep.subr.mxu0 0.0
        %936 = vmatpush1.msra.mxu0 0.0
        %937 = vmatprep.subr.mxu0 0.0
        %938 = vmatpush1.msra.mxu0 0.0
        %939 = vmatprep.subr.mxu0 0.0
        %940 = vmatpush1.msra.mxu0 0.0
        %941 = vmatprep.subr.mxu0 0.0
        %942 = vmatpush1.msra.mxu0 0.0
        %943 = vmatprep.subr.mxu0 0.0
        %944 = vmatpush1.msra.mxu0 0.0
        %945 = vmatprep.mubr.f32.mxu0 0.0
        %946 = vmatmul.mubr.f32.gmra.mrb[0].mxu0 %v781
        %v947 = vpop.f32.mrb[0].mxu0
        %v948 = vadd.f32 %v762, %v947
        %v949 = vpop.f32.mrb[0].mxu0
        %950 = vmatprep.mubr.f32.mxu0 0.0
        %951 = vmatmul.mubr.f32.gmra.mrb[0].mxu0 %v784
        %v952 = vpop.f32.mrb[0].mxu0
        %v953 = vadd.f32 %v767, %v952
        %v954 = vpop.f32.mrb[0].mxu0
        %955 = vmatprep.mubr.f32.mxu0 0.0
        %956 = vmatmul.mubr.f32.gmra.mrb[0].mxu0 %v787
        %v957 = vpop.f32.mrb[0].mxu0
        %v958 = vadd.f32 %v772, %v957
        %v959 = vpop.f32.mrb[0].mxu0
        %960 = vmatprep.mubr.f32.mxu0 0.0
        %961 = vmatmul.mubr.f32.gmra.mrb[0].mxu0 %v790
        %v962 = vpop.f32.mrb[0].mxu0
        %v963 = vadd.f32 %v777, %v962
        %v964 = vpop.f32.mrb[0].mxu0
        %965 = vdwg.mxu0
        %v966 = vld [vmem:[%s7] sm:$0x7]
        %v968 = vlaneseq
        %v969 = vshrl.u32 %v968, 7
        %v970 = vsub.s32 0, %v969
        %v971 = vrot.slane %v966, %v970
        %v972 = vlaneseq
        %v973 = vshrl.u32 %v972, 7
        %v974 = vsub.s32 1, %v973
        %v975 = vrot.slane %v966, %v974
        %v976 = vlaneseq
        %v977 = vshrl.u32 %v976, 7
        %v978 = vsub.s32 2, %v977
        %v979 = vrot.slane %v966, %v978
        %v983 = vadd.f32 %v859, %v971
        %v984 = vadd.f32 %v861, %v975
        %v985 = vadd.f32 %v948, %v979
        %v986 = vadd.f32 %v865, %v971
        %v987 = vadd.f32 %v867, %v975
        %v988 = vadd.f32 %v953, %v979
        %v989 = vadd.f32 %v871, %v971
        %v990 = vadd.f32 %v873, %v975
        %v991 = vadd.f32 %v958, %v979
        %v992 = vadd.f32 %v877, %v971
        %v993 = vadd.f32 %v879, %v975
        %v994 = vadd.f32 %v963, %v979
        %995 = vst [vmem:[%s356 + $0x8] sm:$0xff] %v984
        %996 = vst [vmem:[%s356 + $0x20] sm:$0xff] %v987
        %997 = vst [vmem:[%s356 + $0x38] sm:$0xff] %v990
        %998 = vst [vmem:[%s356 + $0x50] sm:$0xff] %v993
        %vm999 = vcmp.gt.f32.partialorder %v985, 20.0
        %vm1000 = vcmp.gt.f32.partialorder %v988, 20.0
        %vm1001 = vcmp.gt.f32.partialorder %v991, 20.0
        %vm1002 = vcmp.gt.f32.partialorder %v994, 20.0
        %v1003 = vmin.f32 %v985, 20.0
        %v1004 = vmin.f32 %v988, 20.0
        %v1005 = vmin.f32 %v991, 20.0
        %v1006 = vmin.f32 %v994, 20.0
        %v1007 = vmul.f32 %v1003, 1.442695
        %v1008 = vpow.pop %v1007
        %v1009 = vmul.f32 %v1004, 1.442695
        %v1010 = vpow.pop %v1009
        %v1011 = vmul.f32 %v1005, 1.442695
        %v1012 = vpow.pop %v1011
        %v1013 = vmul.f32 %v1006, 1.442695
        %v1014 = vpow.pop %v1013
        %v1015 = vadd.f32 %v1008, 1.0
        %v1016 = vlog2.pop %v1015
        %v1017 = vmul.f32 %v1016, 0.6931472
        %v1018 = vmul.f32 -0.5, %v1008
        %v1019 = vadd.f32 %v1018, 1.0
        %v1020 = vmul.f32 %v1019, %v1008
        %v1021 = vand.u32 2147483647, %v1008
        %vm1022 = vcmp.lt.f32.partialorder %v1021, 0.0004427343
        %v1023 = vsel %vm1022, %v1020, %v1017
        %v1024 = vadd.f32 %v1010, 1.0
        %v1025 = vlog2.pop %v1024
        %v1026 = vmul.f32 %v1025, 0.6931472
        %v1027 = vmul.f32 -0.5, %v1010
        %v1028 = vadd.f32 %v1027, 1.0
        %v1029 = vmul.f32 %v1028, %v1010
        %v1030 = vand.u32 2147483647, %v1010
        %vm1031 = vcmp.lt.f32.partialorder %v1030, 0.0004427343
        %v1032 = vsel %vm1031, %v1029, %v1026
        %v1033 = vadd.f32 %v1012, 1.0
        %v1034 = vlog2.pop %v1033
        %v1035 = vmul.f32 %v1034, 0.6931472
        %v1036 = vmul.f32 -0.5, %v1012
        %v1037 = vadd.f32 %v1036, 1.0
        %v1038 = vmul.f32 %v1037, %v1012
        %v1039 = vand.u32 2147483647, %v1012
        %vm1040 = vcmp.lt.f32.partialorder %v1039, 0.0004427343
        %v1041 = vsel %vm1040, %v1038, %v1035
        %v1042 = vadd.f32 %v1014, 1.0
        %v1043 = vlog2.pop %v1042
        %v1044 = vmul.f32 %v1043, 0.6931472
        %v1045 = vmul.f32 -0.5, %v1014
        %v1046 = vadd.f32 %v1045, 1.0
        %v1047 = vmul.f32 %v1046, %v1014
        %v1048 = vand.u32 2147483647, %v1014
        %vm1049 = vcmp.lt.f32.partialorder %v1048, 0.0004427343
        %v1050 = vsel %vm1049, %v1047, %v1044
        %v1051 = vsel %vm999, %v985, %v1023
        %v1052 = vsel %vm1000, %v988, %v1032
        %v1053 = vsel %vm1001, %v991, %v1041
        %v1054 = vsel %vm1002, %v994, %v1050
        %v1055 = vmax.f32 %v1051, 1e-06
        %v1056 = vmax.f32 %v1052, 1e-06
        %v1057 = vmax.f32 %v1053, 1e-06
        %v1058 = vmax.f32 %v1054, 1e-06
        %1059 = vst [vmem:[%s356 + $0x10] sm:$0xff] %v1055
        %1060 = vst [vmem:[%s356 + $0x28] sm:$0xff] %v1056
        %1061 = vst [vmem:[%s356 + $0x40] sm:$0xff] %v1057
        %1062 = vst [vmem:[%s356 + $0x58] sm:$0xff] %v1058
        %1063 = vmax.xlane.f32.xlu0 %v983
        %v1064 = vpop.xlane.xlu0 %1063
        %1065 = vmax.xlane.f32.xlu0 %v986
        %v1066 = vpop.xlane.xlu0 %1065
        %1067 = vmax.xlane.f32.xlu0 %v989
        %v1068 = vpop.xlane.xlu0 %1067
        %1069 = vmax.xlane.f32.xlu0 %v992
        %v1070 = vpop.xlane.xlu0 %1069
        %v1071 = vsub.f32 %v983, %v1064
        %v1072 = vsub.f32 %v986, %v1066
        %v1073 = vsub.f32 %v989, %v1068
        %v1074 = vsub.f32 %v992, %v1070
        %v1075 = vmul.f32 %v1071, 1.442695
        %v1076 = vpow.pop %v1075
        %v1077 = vmul.f32 %v1072, 1.442695
        %v1078 = vpow.pop %v1077
        %v1079 = vmul.f32 %v1073, 1.442695
        %v1080 = vpow.pop %v1079
        %v1081 = vmul.f32 %v1074, 1.442695
        %v1082 = vpow.pop %v1081
        %v1083 = vld [vmem:[#allocation5] sm:$0xff]
        %v1084 = vld [vmem:[#allocation5 + $0x8] sm:$0xff]
        %v1085 = vld [vmem:[#allocation5 + $0x10] sm:$0xff]
        %v1086 = vld [vmem:[#allocation5 + $0x18] sm:$0xff]
        %v1087 = vld [vmem:[#allocation5 + $0x20] sm:$0xff]
        %v1088 = vld [vmem:[#allocation5 + $0x28] sm:$0xff]
        %v1089 = vld [vmem:[#allocation5 + $0x30] sm:$0xff]
        %v1090 = vld [vmem:[#allocation5 + $0x38] sm:$0xff]
        %v1091 = vld [vmem:[#allocation5 + $0x40] sm:$0xff]
        %v1092 = vld [vmem:[#allocation5 + $0x48] sm:$0xff]
        %v1093 = vld [vmem:[#allocation5 + $0x50] sm:$0xff]
        %v1094 = vld [vmem:[#allocation5 + $0x58] sm:$0xff]
        %v1095 = vld [vmem:[#allocation5 + $0x60] sm:$0xff]
        %v1096 = vld [vmem:[#allocation5 + $0x68] sm:$0xff]
        %v1097 = vld [vmem:[#allocation5 + $0x70] sm:$0xff]
        %v1098 = vld [vmem:[#allocation5 + $0x78] sm:$0xff]
        %1099 = vmatprep.subr.mxu0 0.0
        %1100 = vmatpush1.msra.mxu0 %v1083
        %1101 = vmatprep.subr.mxu0 0.0
        %1102 = vmatpush1.msra.mxu0 %v1084
        %1103 = vmatprep.subr.mxu0 0.0
        %1104 = vmatpush1.msra.mxu0 %v1085
        %1105 = vmatprep.subr.mxu0 0.0
        %1106 = vmatpush1.msra.mxu0 %v1086
        %1107 = vmatprep.subr.mxu0 0.0
        %1108 = vmatpush1.msra.mxu0 %v1087
        %1109 = vmatprep.subr.mxu0 0.0
        %1110 = vmatpush1.msra.mxu0 %v1088
        %1111 = vmatprep.subr.mxu0 0.0
        %1112 = vmatpush1.msra.mxu0 %v1089
        %1113 = vmatprep.subr.mxu0 0.0
        %1114 = vmatpush1.msra.mxu0 %v1090
        %1115 = vmatprep.subr.mxu0 0.0
        %1116 = vmatpush1.msra.mxu0 %v1091
        %1117 = vmatprep.subr.mxu0 0.0
        %1118 = vmatpush1.msra.mxu0 %v1092
        %1119 = vmatprep.subr.mxu0 0.0
        %1120 = vmatpush1.msra.mxu0 %v1093
        %1121 = vmatprep.subr.mxu0 0.0
        %1122 = vmatpush1.msra.mxu0 %v1094
        %1123 = vmatprep.subr.mxu0 0.0
        %1124 = vmatpush1.msra.mxu0 %v1095
        %1125 = vmatprep.subr.mxu0 0.0
        %1126 = vmatpush1.msra.mxu0 %v1096
        %1127 = vmatprep.subr.mxu0 0.0
        %1128 = vmatpush1.msra.mxu0 %v1097
        %1129 = vmatprep.subr.mxu0 0.0
        %1130 = vmatpush1.msra.mxu0 %v1098
        %1131 = vmatprep.subr.mxu0 0.0
        %1132 = vmatpush1.msra.mxu0 0.0
        %1133 = vmatprep.subr.mxu0 0.0
        %1134 = vmatpush1.msra.mxu0 0.0
        %1135 = vmatprep.subr.mxu0 0.0
        %1136 = vmatpush1.msra.mxu0 0.0
        %1137 = vmatprep.subr.mxu0 0.0
        %1138 = vmatpush1.msra.mxu0 0.0
        %1139 = vmatprep.subr.mxu0 0.0
        %1140 = vmatpush1.msra.mxu0 0.0
        %1141 = vmatprep.subr.mxu0 0.0
        %1142 = vmatpush1.msra.mxu0 0.0
        %1143 = vmatprep.subr.mxu0 0.0
        %1144 = vmatpush1.msra.mxu0 0.0
        %1145 = vmatprep.subr.mxu0 0.0
        %1146 = vmatpush1.msra.mxu0 0.0
        %1147 = vmatprep.subr.mxu0 0.0
        %1148 = vmatpush1.msra.mxu0 0.0
        %1149 = vmatprep.subr.mxu0 0.0
        %1150 = vmatpush1.msra.mxu0 0.0
        %1151 = vmatprep.subr.mxu0 0.0
        %1152 = vmatpush1.msra.mxu0 0.0
        %1153 = vmatprep.subr.mxu0 0.0
        %1154 = vmatpush1.msra.mxu0 0.0
        %1155 = vmatprep.subr.mxu0 0.0
        %1156 = vmatpush1.msra.mxu0 0.0
        %1157 = vmatprep.subr.mxu0 0.0
        %1158 = vmatpush1.msra.mxu0 0.0
        %1159 = vmatprep.subr.mxu0 0.0
        %1160 = vmatpush1.msra.mxu0 0.0
        %1161 = vmatprep.subr.mxu0 0.0
        %1162 = vmatpush1.msra.mxu0 0.0
        %1163 = vmatprep.mubr.f32.mxu0 0.0
        %1164 = vmatmul.mubr.f32.gmra.mrb[0].mxu0 %v1076
        %v1165 = vpop.f32.mrb[0].mxu0
        %v1166 = vadd.f32 0.0, %v1165
        %v1167 = vpop.f32.mrb[0].mxu0
        %1168 = vmatprep.mubr.f32.mxu0 0.0
        %1169 = vmatmul.mubr.f32.gmra.mrb[0].mxu0 %v1078
        %v1170 = vpop.f32.mrb[0].mxu0
        %v1171 = vadd.f32 0.0, %v1170
        %v1172 = vpop.f32.mrb[0].mxu0
        %1173 = vmatprep.mubr.f32.mxu0 0.0
        %1174 = vmatmul.mubr.f32.gmra.mrb[0].mxu0 %v1080
        %v1175 = vpop.f32.mrb[0].mxu0
        %v1176 = vadd.f32 0.0, %v1175
        %v1177 = vpop.f32.mrb[0].mxu0
        %1178 = vmatprep.mubr.f32.mxu0 0.0
        %1179 = vmatmul.mubr.f32.gmra.mrb[0].mxu0 %v1082
        %v1180 = vpop.f32.mrb[0].mxu0
        %v1181 = vadd.f32 0.0, %v1180
        %v1182 = vpop.f32.mrb[0].mxu0
        %1183 = vdwg.mxu0
        %v1184 = vmax.f32 %v1166, 1e-30
        %v1185 = vmax.f32 %v1171, 1e-30
        %v1186 = vmax.f32 %v1176, 1e-30
        %v1187 = vmax.f32 %v1181, 1e-30
        %v1188 = vrcp.pop %v1184
        %v1189 = vmul.f32 %v1076, %v1188
        %v1190 = vrcp.pop %v1185
        %v1191 = vmul.f32 %v1078, %v1190
        %v1192 = vrcp.pop %v1186
        %v1193 = vmul.f32 %v1080, %v1192
        %v1194 = vrcp.pop %v1187
        %v1195 = vmul.f32 %v1082, %v1194
        %1196 = vst [vmem:[%s356] sm:$0xff] %v1189
        %1197 = vst [vmem:[%s356 + $0x18] sm:$0xff] %v1191
        %1198 = vst [vmem:[%s356 + $0x30] sm:$0xff] %v1193
        %1199 = vst [vmem:[%s356 + $0x48] sm:$0xff] %v1195
        %s1200 = sand.u32 %s227, 1
        %s1201 = scalar_lea.sflag [#allocation4], %s1200
        %s1202 = sand.u32 %s227, 1
        %s1203 = smul.addr %s1202, 96
        %s1204 = scalar_lea.vmem [#allocation7], %s1203
        // Predicated region
        $region65: #{tpu_custom_call.1} parent=55 // pred_check
          %p1205 = pneg %p237
        $region66: #{tpu_custom_call.1} parent=55 // pred_check_branch
          %1207 = sbr.rel (%p1205) target = $region68
        $region67: #{tpu_custom_call.1} parent=55 // pred_region
          %s1208 = smul.u32 4, %s25
          %s1210 = ssub.s32 1536, 1536
          %1211 = vsyncadd %s1201, %s1210
          %s1212 = smul.addr %s1208, 3
          %s1213 = smul.addr %s1212, 128
          %s1214 = scalar_lea.hbm %s9, %s1213
          %s1215 = sshll.u32 %s1204, 4
          %s1216 = int_to_ptr.vmem [resolvable:$true] %s1215
          %1221 = dma.vmem_to_hbm [thread:$0]  %s1216, 1536, %s1214, %s1201, 384, 384, 24
        $region68: #{tpu_custom_call.1} parent=55 // pred_fallthru
          _
      $region56: #{tpu_custom_call.1} parent=5 // pred_fallthru
        _
      %p1222 = scmp.le.s32.totalorder 2, %s20
      // Predicated region
      $region69: #{tpu_custom_call.1} parent=5 // pred_check
        %p1223 = pneg %p1222
      $region70: #{tpu_custom_call.1} parent=5 // pred_check_branch
        %1225 = sbr.rel (%p1223) target = $region72
      $region71: #{tpu_custom_call.1} parent=5 // pred_region
        %s1226 = ssub.s32 %s20, 2
        // Predicated region
        $region73: #{tpu_custom_call.1} parent=71 // pred_check
          %p1227 = pneg %p243
        $region74: #{tpu_custom_call.1} parent=71 // pred_check_branch
          %1229 = sbr.rel (%p1227) target = $region76
        $region75: #{tpu_custom_call.1} parent=71 // pred_region
          %s1230 = sand.u32 %s228, 1
          %s1231 = scalar_lea.sflag [#allocation4], %s1230
          %s1232 = sand.u32 %s228, 1
          %s1233 = smul.addr %s1232, 96
          %s1234 = scalar_lea.vmem [#allocation7], %s1233
          %1235 = dma.done %s1231, 1536
        $region76: #{tpu_custom_call.1} parent=71 // pred_fallthru
          _
      $region72: #{tpu_custom_call.1} parent=5 // pred_fallthru
        _
    $region6: #{tpu_custom_call.1} parent=1 // loop_footer
      %s24 = sadd.s32 1, %s20
    $region7: #{tpu_custom_call.1} parent=1 // loop_footer_branch
      %19 = sbr.rel target = $region3
    $region8: #{tpu_custom_call.1} parent=1 // loop_exit
      _
    %1236 = vsyncpa [#allocation3], 1
    %s1237 = scalar_lea.sflag [#allocation3], 1
    %1238 = vsyncpa %s1237, 1
    %1239 = vsyncpa [#allocation6], 1
    %1240 = vsyncpa [#allocation4], 1
    %s1241 = scalar_lea.sflag [#allocation4], 1
    %1242 = vsyncpa %s1241, 1

</llo_original>
